<compile_context>
chip_gen: v6e
topology: v6e:2x2x1
jax: 0.10.0
libtpu: 0.0.40
codegen_flags: <defaults>
</compile_context>

<pallas_src>
import functools

import jax
import jax.numpy as jnp
from jax.experimental import pallas as pl
from jax.experimental.pallas import tpu as pltpu


def _linear_relu_kernel(wb_ref, x_ref, o_ref, *, in_features):
    # wb : (IN+1,) f32 in SMEM  -- wb[0:IN] = weights, wb[IN] = bias
    # x  : (N, IN)  f32 in VMEM -- batch on sublanes, features on lanes
    # o  : (N, 1)   f32 in VMEM
    x = x_ref[...]                                            # one VMEM load
    acc = wb_ref[in_features] + wb_ref[0] * x[:, 0:1]         # bias + w0 * col0
    for i in range(1, in_features):                           # unrolled VPU FMAs
        acc = acc + wb_ref[i] * x[:, i:i + 1]
    o_ref[...] = jnp.maximum(acc, 0.0).astype(o_ref.dtype)    # ReLU


def pack_params(w, b):
    """Pack Linear params (w: (IN, 1), b: (1,) or (1,1)) into a flat f32[IN+1]."""
    return jnp.concatenate([w.reshape(-1), b.reshape(-1)]).astype(jnp.float32)


def linear_relu(x, wb):
    """x: (N, IN) f32, wb: (IN+1,) f32 packed [w..., b] -> (N, 1) = relu(x @ w + b)."""
    n, in_f = x.shape
    assert wb.shape == (in_f + 1,), "packed params must be (in_features + 1,)"

    flops = 2 * n * in_f
    bytes_accessed = 4 * (n * in_f + in_f + 1 + n)

    return pl.pallas_call(
        functools.partial(_linear_relu_kernel, in_features=in_f),
        out_shape=jax.ShapeDtypeStruct((n, 1), jnp.float32),
        in_specs=[
            pl.BlockSpec(memory_space=pltpu.MemorySpace.SMEM),   # packed [w, b]
            pl.BlockSpec(memory_space=pltpu.MemorySpace.VMEM),   # x (N, IN)
        ],
        out_specs=pl.BlockSpec(memory_space=pltpu.MemorySpace.VMEM),
        cost_estimate=pl.CostEstimate(
            flops=flops, transcendentals=0, bytes_accessed=bytes_accessed
        ),
    )(wb, x)
    # TODO(synk): for real sizes (N >= 256 or IN/OUT >= 128) switch to a gridded
    # MXU matmul: grid over the batch/lane axis with 128-multiple tiles,
    # dimension_semantics=("parallel",) so v7x's two TensorCores shard it, f32
    # VMEM accumulator with pl.when init/finalize.  (On v7x a quantized variant
    # must target fp8, not int8 -- its MXU has no int path.)


if __name__ == "__main__":
    N, IN, OUT = 10, 8, 1

    key = jax.random.PRNGKey(0)
    kx, kw, kb = jax.random.split(key, 3)

    # Deterministic init mimicking nn.Linear's uniform(-1/sqrt(in), 1/sqrt(in)).
    bound = 1.0 / jnp.sqrt(jnp.float32(IN))
    w = jax.random.uniform(kw, (IN, OUT), jnp.float32, -bound, bound)
    b = jax.random.uniform(kb, (OUT,), jnp.float32, -bound, bound)

    x2 = jax.random.normal(kx, (N, IN), jnp.float32)

    wb = pack_params(w, b)   # one-time parameter packing, outside the jit'd call

    out = jax.jit(linear_relu)(x2, wb)
    jax.block_until_ready(out)

    # Sanity check against plain-JAX reference.
    ref = jnp.maximum(x2 @ w + b, 0.0)
    assert out.shape == (N, OUT)
    assert jnp.allclose(out, ref, atol=1e-5, rtol=1e-5)

    print("KERNEL_OK")
</pallas_src>

<mosaic_0001>
module attributes {stable_mosaic.version = 11 : i64} {
  func.func @_linear_relu_kernel(%arg0: memref<9xf32, #tpu.memory_space<smem>>, %arg1: memref<10x8xf32, #tpu.memory_space<vmem>>, %arg2: memref<10x1xf32, #tpu.memory_space<vmem>>) attributes {dimension_semantics = [], scalar_prefetch = 0 : i64, scratch_operands = 0 : i64, tpu.core_type = #tpu.core_type<tc>} {
    %c0 = arith.constant 0 : index
    %c0_0 = arith.constant 0 : index
    %0 = vector.load %arg1[%c0, %c0_0] : memref<10x8xf32, #tpu.memory_space<vmem>>, vector<10x8xf32>
    %c8 = arith.constant 8 : index
    %1 = memref.load %arg0[%c8] : memref<9xf32, #tpu.memory_space<smem>>
    %c0_1 = arith.constant 0 : index
    %2 = memref.load %arg0[%c0_1] : memref<9xf32, #tpu.memory_space<smem>>
    %3 = vector.extract_strided_slice %0 {offsets = [0, 0], sizes = [10, 1], strides = [1, 1]} : vector<10x8xf32> to vector<10x1xf32>
    %4 = vector.broadcast %2 : f32 to vector<10x1xf32>
    %5 = arith.mulf %4, %3 : vector<10x1xf32>
    %6 = vector.broadcast %1 : f32 to vector<10x1xf32>
    %7 = arith.addf %6, %5 : vector<10x1xf32>
    %c1 = arith.constant 1 : index
    %8 = memref.load %arg0[%c1] : memref<9xf32, #tpu.memory_space<smem>>
    %9 = vector.extract_strided_slice %0 {offsets = [0, 1], sizes = [10, 1], strides = [1, 1]} : vector<10x8xf32> to vector<10x1xf32>
    %10 = vector.broadcast %8 : f32 to vector<10x1xf32>
    %11 = arith.mulf %10, %9 : vector<10x1xf32>
    %12 = arith.addf %7, %11 : vector<10x1xf32>
    %c2 = arith.constant 2 : index
    %13 = memref.load %arg0[%c2] : memref<9xf32, #tpu.memory_space<smem>>
    %14 = vector.extract_strided_slice %0 {offsets = [0, 2], sizes = [10, 1], strides = [1, 1]} : vector<10x8xf32> to vector<10x1xf32>
    %15 = vector.broadcast %13 : f32 to vector<10x1xf32>
    %16 = arith.mulf %15, %14 : vector<10x1xf32>
    %17 = arith.addf %12, %16 : vector<10x1xf32>
    %c3 = arith.constant 3 : index
    %18 = memref.load %arg0[%c3] : memref<9xf32, #tpu.memory_space<smem>>
    %19 = vector.extract_strided_slice %0 {offsets = [0, 3], sizes = [10, 1], strides = [1, 1]} : vector<10x8xf32> to vector<10x1xf32>
    %20 = vector.broadcast %18 : f32 to vector<10x1xf32>
    %21 = arith.mulf %20, %19 : vector<10x1xf32>
    %22 = arith.addf %17, %21 : vector<10x1xf32>
    %c4 = arith.constant 4 : index
    %23 = memref.load %arg0[%c4] : memref<9xf32, #tpu.memory_space<smem>>
    %24 = vector.extract_strided_slice %0 {offsets = [0, 4], sizes = [10, 1], strides = [1, 1]} : vector<10x8xf32> to vector<10x1xf32>
    %25 = vector.broadcast %23 : f32 to vector<10x1xf32>
    %26 = arith.mulf %25, %24 : vector<10x1xf32>
    %27 = arith.addf %22, %26 : vector<10x1xf32>
    %c5 = arith.constant 5 : index
    %28 = memref.load %arg0[%c5] : memref<9xf32, #tpu.memory_space<smem>>
    %29 = vector.extract_strided_slice %0 {offsets = [0, 5], sizes = [10, 1], strides = [1, 1]} : vector<10x8xf32> to vector<10x1xf32>
    %30 = vector.broadcast %28 : f32 to vector<10x1xf32>
    %31 = arith.mulf %30, %29 : vector<10x1xf32>
    %32 = arith.addf %27, %31 : vector<10x1xf32>
    %c6 = arith.constant 6 : index
    %33 = memref.load %arg0[%c6] : memref<9xf32, #tpu.memory_space<smem>>
    %34 = vector.extract_strided_slice %0 {offsets = [0, 6], sizes = [10, 1], strides = [1, 1]} : vector<10x8xf32> to vector<10x1xf32>
    %35 = vector.broadcast %33 : f32 to vector<10x1xf32>
    %36 = arith.mulf %35, %34 : vector<10x1xf32>
    %37 = arith.addf %32, %36 : vector<10x1xf32>
    %c7 = arith.constant 7 : index
    %38 = memref.load %arg0[%c7] : memref<9xf32, #tpu.memory_space<smem>>
    %39 = vector.extract_strided_slice %0 {offsets = [0, 7], sizes = [10, 1], strides = [1, 1]} : vector<10x8xf32> to vector<10x1xf32>
    %40 = vector.broadcast %38 : f32 to vector<10x1xf32>
    %41 = arith.mulf %40, %39 : vector<10x1xf32>
    %42 = arith.addf %37, %41 : vector<10x1xf32>
    %cst = arith.constant 0.000000e+00 : f32
    %43 = vector.broadcast %cst : f32 to vector<10x1xf32>
    %44 = arith.maximumf %42, %43 : vector<10x1xf32>
    %c0_2 = arith.constant 0 : index
    %c0_3 = arith.constant 0 : index
    %45 = vector.load %arg2[%c0_2, %c0_3] : memref<10x1xf32, #tpu.memory_space<vmem>>, vector<10x1xf32>
    tpu.vector_store %arg2[%c0_2, %c0_3], %44 {strides = array<i32>} : memref<10x1xf32, #tpu.memory_space<vmem>>, vector<10x1xf32>,
    return
  }
}

</mosaic_0001>

<llo_original>
// kernel: linear_relu.1
$region0: #{linear_relu.1}
  #allocation0 [shape = 'u32[]', space=smem, size = 0x4, offset = 0x4, fixed_abs, tag = 'smem constant byte address 0x4 - core index']
  #allocation1 [shape = 'u32[144,128]{1,0:T(1,128)}', space=vmem, size = 0x12000, scoped, tag = 'internal scratch']
  %s0 = inlined_call_operand.vmem [shape: f32[9], index: 0, kind: input, shape index: {}]
  %s1 = inlined_call_operand.vmem [shape: f32[10,8], index: 1, kind: input, shape index: {}]
  %s2 = inlined_call_operand.vmem [shape: f32[10,1], index: 2, kind: output, shape index: {}]
  %s3 = sld [smem:[#allocation0]]
  $region22: #{linear_relu.1} parent=0
    _
  %s5 = ssub.s32 1, %s3
  %s6 = scalar_select 0, %s5, %s3
  $region1: #{linear_relu.1} parent=0
    #allocation2 [shape = 'u8[512]{0}', space=smem, size = 0x200, scoped, tag = 'input window, operand 0, single buffered']
    #allocation3 [shape = 's32[1]{0}', space=sflag, size = 0x4, scoped, tag = 'scoped memory for linear_relu.1']
    %7 = vsyncpa [#allocation3], 0
    // Predicated region
    $region2: #{linear_relu.1} parent=1 // pred_check
      _
    $region3: #{linear_relu.1} parent=1 // pred_check_branch
      %9 = sbr.rel (0) target = $region5
    $region4: #{linear_relu.1} parent=1 // pred_region
      %s11 = ssub.s32 16, 16
      %12 = vsyncadd [#allocation3], %s11
      %s14 = sshll.u32 %s0, 4
      %s15 = int_to_ptr.vmem [resolvable:$true] %s14
      %17 = dma.vmem_to_smem %s15, 16, [#allocation2], [#allocation3]
    $region5: #{linear_relu.1} parent=1 // pred_fallthru
      _
    // Predicated region
    $region6: #{linear_relu.1} parent=1 // pred_check
      _
    $region7: #{linear_relu.1} parent=1 // pred_check_branch
      %19 = sbr.rel (0) target = $region9
    $region8: #{linear_relu.1} parent=1 // pred_region
      _
    $region9: #{linear_relu.1} parent=1 // pred_fallthru
      _
    // Predicated region
    $region10: #{linear_relu.1} parent=1 // pred_check
      _
    $region11: #{linear_relu.1} parent=1 // pred_check_branch
      %21 = sbr.rel (0) target = $region13
    $region12: #{linear_relu.1} parent=1 // pred_region
      %22 = dma.done [#allocation3], 16
    $region13: #{linear_relu.1} parent=1 // pred_fallthru
      _
    %23 = sfence
    %v24 = vld [vmem:[%s1] sm:$0xff]
    %v25 = vld [vmem:[%s1 + $0x8] sm:$0x3]
    %s26 = sld [smem:[#allocation2 + $0x8]]
    %s27 = sld [smem:[#allocation2]]
    %v28 = vstv %s27
    %v29 = vmul.f32 %v28, %v24
    %v30 = vmul.f32 %v28, %v25
    %v31 = vstv %s26
    %v32 = vadd.f32 %v31, %v29
    %v33 = vadd.f32 %v31, %v30
    %s34 = sld [smem:[#allocation2 + $0x1]]
    %v35 = vstv %s34
    %v36 = vmul.f32 %v35, %v24
    %v37 = vmul.f32 %v35, %v25
    %40 = vrot.lane.b32.xlu0 %v36, 127
    %v41 = vpop.permute.xlu0 %40
    %42 = vrot.lane.b32.xlu0 %v37, 127
    %v43 = vpop.permute.xlu0 %42
    %v46 = vadd.f32 %v32, %v41
    %v47 = vadd.f32 %v33, %v43
    %s48 = sld [smem:[#allocation2 + $0x2]]
    %v49 = vstv %s48
    %v50 = vmul.f32 %v49, %v24
    %v51 = vmul.f32 %v49, %v25
    %54 = vrot.lane.b32.xlu0 %v50, 126
    %v55 = vpop.permute.xlu0 %54
    %56 = vrot.lane.b32.xlu0 %v51, 126
    %v57 = vpop.permute.xlu0 %56
    %v60 = vadd.f32 %v46, %v55
    %v61 = vadd.f32 %v47, %v57
    %s62 = sld [smem:[#allocation2 + $0x3]]
    %v63 = vstv %s62
    %v64 = vmul.f32 %v63, %v24
    %v65 = vmul.f32 %v63, %v25
    %68 = vrot.lane.b32.xlu0 %v64, 125
    %v69 = vpop.permute.xlu0 %68
    %70 = vrot.lane.b32.xlu0 %v65, 125
    %v71 = vpop.permute.xlu0 %70
    %v74 = vadd.f32 %v60, %v69
    %v75 = vadd.f32 %v61, %v71
    %s76 = sld [smem:[#allocation2 + $0x4]]
    %v77 = vstv %s76
    %v78 = vmul.f32 %v77, %v24
    %v79 = vmul.f32 %v77, %v25
    %82 = vrot.lane.b32.xlu0 %v78, 124
    %v83 = vpop.permute.xlu0 %82
    %84 = vrot.lane.b32.xlu0 %v79, 124
    %v85 = vpop.permute.xlu0 %84
    %v88 = vadd.f32 %v74, %v83
    %v89 = vadd.f32 %v75, %v85
    %s90 = sld [smem:[#allocation2 + $0x5]]
    %v91 = vstv %s90
    %v92 = vmul.f32 %v91, %v24
    %v93 = vmul.f32 %v91, %v25
    %96 = vrot.lane.b32.xlu0 %v92, 123
    %v97 = vpop.permute.xlu0 %96
    %98 = vrot.lane.b32.xlu0 %v93, 123
    %v99 = vpop.permute.xlu0 %98
    %v102 = vadd.f32 %v88, %v97
    %v103 = vadd.f32 %v89, %v99
    %s104 = sld [smem:[#allocation2 + $0x6]]
    %v105 = vstv %s104
    %v106 = vmul.f32 %v105, %v24
    %v107 = vmul.f32 %v105, %v25
    %110 = vrot.lane.b32.xlu0 %v106, 122
    %v111 = vpop.permute.xlu0 %110
    %112 = vrot.lane.b32.xlu0 %v107, 122
    %v113 = vpop.permute.xlu0 %112
    %v116 = vadd.f32 %v102, %v111
    %v117 = vadd.f32 %v103, %v113
    %s118 = sld [smem:[#allocation2 + $0x7]]
    %v119 = vstv %s118
    %v120 = vmul.f32 %v119, %v24
    %v121 = vmul.f32 %v119, %v25
    %124 = vrot.lane.b32.xlu0 %v120, 121
    %v125 = vpop.permute.xlu0 %124
    %126 = vrot.lane.b32.xlu0 %v121, 121
    %v127 = vpop.permute.xlu0 %126
    %v130 = vadd.f32 %v116, %v125
    %v131 = vadd.f32 %v117, %v127
    %v132 = vmax.f32 %v130, 0.0
    %v133 = vmax.f32 %v131, 0.0
    %vm134 = vcmask 7168
    %135 = vst.msk [vmem:[%s2] sm:$0xff] %vm134, %v132
    %vm136 = vcmask 1024
    %137 = vst.msk [vmem:[%s2 + $0x8] sm:$0x3] %vm136, %v133
    // Predicated region
    $region14: #{linear_relu.1} parent=1 // pred_check
      _
    $region15: #{linear_relu.1} parent=1 // pred_check_branch
      %139 = sbr.rel (0) target = $region17
    $region16: #{linear_relu.1} parent=1 // pred_region
      _
    $region17: #{linear_relu.1} parent=1 // pred_fallthru
      _
    // Predicated region
    $region18: #{linear_relu.1} parent=1 // pred_check
      _
    $region19: #{linear_relu.1} parent=1 // pred_check_branch
      %141 = sbr.rel (0) target = $region21
    $region20: #{linear_relu.1} parent=1 // pred_region
      _
    $region21: #{linear_relu.1} parent=1 // pred_fallthru
      _
    %142 = vsyncpa [#allocation3], 1

</llo_original>
